<compile_context>
chip_gen: v7x
topology: tpu7x:2x2x1
jax: 0.10.0
libtpu: 0.0.40
codegen_flags: <defaults>
</compile_context>

<pallas_src>
import jax
import jax.numpy as jnp
from jax.experimental import pallas as pl
from jax.experimental.pallas import tpu as pltpu

EPS = 1e-5  # nn.BatchNorm3d default


def _round_up(v, m):
    return ((v + m - 1) // m) * m


def _vmem_capacity_bytes():
    try:
        return int(pltpu.get_tpu_info().vmem_capacity_bytes)
    except Exception:
        return 64 * 1024 * 1024  # conservative (v7x-sized) default


# ---------------------------------------------------------------------------
# Kernels
# ---------------------------------------------------------------------------

def _fused_bn_kernel(x_ref, g_ref, b_ref, o_ref):
    """Single-pass segment BN (stats + normalize) for one (segment, chan-tile).

    x_ref / o_ref: (B, c_tile, L)            [collapsed lane-dense layout]  or
                   (B, c_tile, 1, dis, H*W)  [unaligned 5-D layout]
    g_ref / b_ref: (1, 1, c_tile, 1) or (1, c_tile, 1, 1) per-channel affine.
    """
    x = x_ref[...]
    xf = x if x.dtype == jnp.float32 else x.astype(jnp.float32)
    red_axes = tuple(a for a in range(xf.ndim) if a != 1)
    c_tile = xf.shape[1]

    mean = jnp.mean(xf, axis=red_axes, keepdims=True)
    xc = xf - mean
    # Centered (two-pass) variance: matches E[(x-mean)^2] of the reference and
    # avoids E[x^2]-E[x]^2 cancellation; extra pass is VMEM-only.
    var = jnp.mean(xc * xc, axis=red_axes, keepdims=True)

    bshape = (1, c_tile) + (1,) * (xf.ndim - 2)
    g = g_ref[...].reshape(bshape)
    b = b_ref[...].reshape(bshape)

    scale = g * jax.lax.rsqrt(var + EPS)  # rsqrt -> EUP slot
    # One FMA per element on the write pass.
    o_ref[...] = (xc * scale + b).astype(o_ref.dtype)


def _stats_kernel(x_ref, sum_ref, sq_ref):
    """Accumulate per-channel sum / sum-of-squares over lane chunks.

    Grid = (segment, n_c, n_l); the chunk axis (last, 'arbitrary') keeps the
    (1, 1, c_tile, 1) f32 accumulators resident across chunks.
    """
    @pl.when(pl.program_id(2) == 0)
    def _init():
        sum_ref[...] = jnp.zeros_like(sum_ref)
        sq_ref[...] = jnp.zeros_like(sq_ref)

    x = x_ref[...]  # (B, c_tile, l_tile)
    xf = x if x.dtype == jnp.float32 else x.astype(jnp.float32)
    # TODO(synk): single-pass sum/sumsq accumulation (not Welford); f32
    # accumulators are fine for normal inputs but can lose precision for
    # strongly off-centered data.
    s = jnp.sum(xf, axis=(0, 2), keepdims=True)       # (1, c_tile, 1)
    q = jnp.sum(xf * xf, axis=(0, 2), keepdims=True)  # (1, c_tile, 1)
    sum_ref[...] += s.reshape(sum_ref.shape)
    sq_ref[...] += q.reshape(sq_ref.shape)


def _normalize_kernel(x_ref, scale_ref, shift_ref, o_ref):
    """Apply precomputed per-channel scale/shift to one lane chunk."""
    x = x_ref[...]  # (B, c_tile, l_tile)
    xf = x if x.dtype == jnp.float32 else x.astype(jnp.float32)
    c_tile = xf.shape[1]
    scale = scale_ref[...].reshape(1, c_tile, 1)
    shift = shift_ref[...].reshape(1, c_tile, 1)
    o_ref[...] = (xf * scale + shift).astype(o_ref.dtype)


# ---------------------------------------------------------------------------
# Wrapper
# ---------------------------------------------------------------------------

def sync_tgn_forward(x, gamma, beta, segment, *, vmem_budget_bytes=None):
    """Segment-wise training-mode BatchNorm3d.

    x: (B, C, T, H, W); gamma/beta: (segment, C). Returns an array shaped like
    x where each temporal segment is normalized with its own batch statistics
    and affine parameters.
    """
    B, C, T, H, W = x.shape
    assert T % segment == 0, f"temporal size is {T} should be divided by {segment}"
    dis = T // segment
    HW = H * W
    L = dis * HW  # per-segment elements per (batch, channel)
    itemsize = x.dtype.itemsize
    sublane = {4: 8, 2: 16, 1: 32}.get(itemsize, 8)

    vmem_cap = _vmem_capacity_bytes()
    if vmem_budget_bytes is None:
        # ~0.7 of physical VMEM for this kernel's live buffers:
        #   v5e/v6e (128 MiB) -> ~90 MiB budget (12-16 MiB x-blocks),
        #   v7x     (64 MiB)  -> ~45 MiB budget (6-8 MiB x-blocks).
        vmem_budget_bytes = min(int(vmem_cap * 0.7), 96 * 1024 * 1024)
    slack = 256 * 1024

    collapsed = (L % 128 == 0)  # lane-dense layout is block-rule legal

    gamma = gamma.astype(jnp.float32)
    beta = beta.astype(jnp.float32)

    # ---- padded-VMEM cost model (accounts for (sublane, 128) tiling) -------
    def x_block_elems(c_tile):
        if collapsed:
            return B * _round_up(c_tile, sublane) * L            # L % 128 == 0
        return B * c_tile * _round_up(dis, sublane) * _round_up(HW, 128)

    def fused_live_bytes(c_tile):
        elems = x_block_elems(c_tile)
        io = 4 * elems * itemsize                                 # in+out, 2-buffered
        temps = 3 * elems * 4                                     # f32 intermediates
        if collapsed:
            param_blk = _round_up(c_tile, 8) * 128 * 4            # (1,1,c_tile,1)
        else:
            param_blk = c_tile * 8 * 128 * 4                      # (1,c_tile,1,1) padded
        return io + temps + 4 * param_blk + slack

    def vmem_limit(live):
        return int(min(max(32 * 1024 * 1024, live + 8 * 1024 * 1024),
                       max(vmem_cap - 4 * 1024 * 1024, 32 * 1024 * 1024)))

    n = x.size
    cost = pl.CostEstimate(flops=8 * n,
                           transcendentals=segment * C,
                           bytes_accessed=2 * n * itemsize + 2 * int(gamma.size) * 4)

    # ---- channel-tile selection ---------------------------------------------
    legal_c = [d for d in range(1, C + 1)
               if C % d == 0 and (d % sublane == 0 or d == C)]
    fitting = [d for d in legal_c if fused_live_bytes(d) <= vmem_budget_bytes]

    def _tile_pref(d):
        steps = segment * (C // d)
        # Prefer >= 8 grid steps (pipeline depth), then an even step count
        # (v7x: 2 TensorCores share "parallel" axes), then the biggest block.
        return (steps >= 8, steps % 2 == 0, d)

    # ---- fused single-pass path ---------------------------------------------
    def run_fused(c_tile):
        n_c = C // c_tile
        if collapsed:
            xs = x.reshape(B, C, segment * L)
            g = gamma.reshape(segment, n_c, c_tile, 1)
            b = beta.reshape(segment, n_c, c_tile, 1)
            x_spec = pl.BlockSpec((B, c_tile, L), lambda s, c: (0, c, s))
            p_spec = pl.BlockSpec((1, 1, c_tile, 1), lambda s, c: (s, c, 0, 0))
            out_shape = jax.ShapeDtypeStruct((B, C, segment * L), x.dtype)
        else:
            xs = x.reshape(B, C, segment, dis, HW)
            g = gamma.reshape(segment, C, 1, 1)
            b = beta.reshape(segment, C, 1, 1)
            x_spec = pl.BlockSpec((B, c_tile, 1, dis, HW),
                                  lambda s, c: (0, c, s, 0, 0))
            p_spec = pl.BlockSpec((1, c_tile, 1, 1), lambda s, c: (s, c, 0, 0))
            out_shape = jax.ShapeDtypeStruct((B, C, segment, dis, HW), x.dtype)
        live = fused_live_bytes(c_tile)
        return pl.pallas_call(
            _fused_bn_kernel,
            out_shape=out_shape,
            grid_spec=pltpu.PrefetchScalarGridSpec(
                num_scalar_prefetch=0,
                grid=(segment, n_c),
                in_specs=[x_spec, p_spec, p_spec],
                out_specs=x_spec,
            ),
            compiler_params=pltpu.CompilerParams(
                dimension_semantics=("parallel", "parallel"),
                vmem_limit_bytes=vmem_limit(live)),
            cost_estimate=cost,
        )(xs, g, b)

    # ---- two-phase fallback (oversized segments, collapsed layout) ----------
    def run_two_phase():
        c_tile = min(legal_c)
        n_c = C // c_tile

        def fb_live(l_tile):
            elems = B * _round_up(c_tile, sublane) * l_tile
            param_blk = _round_up(c_tile, 8) * 128 * 4
            return 4 * elems * itemsize + 3 * elems * 4 + 8 * param_blk + slack

        lt_cands = [lt for lt in range(128, L + 1, 128) if L % lt == 0]
        lt_fit = [lt for lt in lt_cands if fb_live(lt) <= vmem_budget_bytes]
        # TODO(synk): if even a 128-lane chunk does not fit (gigantic B), an
        # additional batch-axis split would be required.
        l_tile = max(lt_fit) if lt_fit else min(lt_cands)
        n_l = L // l_tile
        live = fb_live(l_tile)

        xs = x.reshape(B, C, segment * L)
        x_spec = pl.BlockSpec((B, c_tile, l_tile),
                              lambda s, c, k: (0, c, s * n_l + k))
        stat_spec = pl.BlockSpec((1, 1, c_tile, 1), lambda s, c, k: (s, c, 0, 0))

        # Pass 1: per-(segment, channel) sum / sum-of-squares.
        ssum, ssq = pl.pallas_call(
            _stats_kernel,
            out_shape=(jax.ShapeDtypeStruct((segment, n_c, c_tile, 1), jnp.float32),
                       jax.ShapeDtypeStruct((segment, n_c, c_tile, 1), jnp.float32)),
            grid_spec=pltpu.PrefetchScalarGridSpec(
                num_scalar_prefetch=0,
                grid=(segment, n_c, n_l),
                in_specs=[x_spec],
                out_specs=(stat_spec, stat_spec),
            ),
            compiler_params=pltpu.CompilerParams(
                dimension_semantics=("parallel", "parallel", "arbitrary"),
                vmem_limit_bytes=vmem_limit(live)),
            cost_estimate=pl.CostEstimate(flops=3 * n, transcendentals=0,
                                          bytes_accessed=n * itemsize),
        )(xs)

        # Tiny per-channel epilogue in plain JAX (segment * C scalars).
        count = jnp.float32(B * L)
        mean = ssum / count
        var = jnp.maximum(ssq / count - mean * mean, 0.0)
        g = gamma.reshape(segment, n_c, c_tile, 1)
        b = beta.reshape(segment, n_c, c_tile, 1)
        scale = g * jax.lax.rsqrt(var + EPS)
        shift = b - mean * scale

        # Pass 2: normalize.
        return pl.pallas_call(
            _normalize_kernel,
            out_shape=jax.ShapeDtypeStruct((B, C, segment * L), x.dtype),
            grid_spec=pltpu.PrefetchScalarGridSpec(
                num_scalar_prefetch=0,
                grid=(segment, n_c, n_l),
                in_specs=[x_spec, stat_spec, stat_spec],
                out_specs=x_spec,
            ),
            compiler_params=pltpu.CompilerParams(
                dimension_semantics=("parallel", "parallel", "parallel"),
                vmem_limit_bytes=vmem_limit(live)),
            cost_estimate=pl.CostEstimate(flops=2 * n, transcendentals=0,
                                          bytes_accessed=2 * n * itemsize),
        )(xs, scale, shift)

    if fitting:
        out = run_fused(max(fitting, key=_tile_pref))
    elif collapsed:
        out = run_two_phase()
    else:
        # TODO(synk): oversized AND lane-unaligned (dis*H*W % 128 != 0)
        # segments would need a dis-chunked two-phase path; use the smallest
        # legal channel tile and let the scoped-VMEM limit stretch to capacity.
        out = run_fused(min(legal_c))

    return out.reshape(B, C, T, H, W)


# ---------------------------------------------------------------------------
# Reference + self-test
# ---------------------------------------------------------------------------

def _reference(x, gamma, beta, segment):
    """Pure-JAX reference of the same training-mode segment-wise BN."""
    B, C, T, H, W = x.shape
    dis = T // segment
    outs = []
    for i in range(segment):
        a = x[:, :, dis * i:dis * (i + 1)]
        mean = jnp.mean(a, axis=(0, 2, 3, 4), keepdims=True)
        var = jnp.mean((a - mean) ** 2, axis=(0, 2, 3, 4), keepdims=True)
        gg = gamma[i].reshape(1, C, 1, 1, 1)
        bb = beta[i].reshape(1, C, 1, 1, 1)
        outs.append(gg * (a - mean) / jnp.sqrt(var + EPS) + bb)
    return jnp.concatenate(outs, axis=2)


if __name__ == "__main__":
    root = jax.random.PRNGKey(0)

    cases = [
        # (name, (B, C, T, H, W), segment, extra kwargs)
        ("lane_dense", (2, 4, 8, 16, 16), 2, {}),          # collapsed fused path
        ("unaligned", (2, 8, 8, 6, 6), 2, {}),             # 5-D fused path (HW*dis % 128 != 0)
        ("chunked", (2, 4, 8, 16, 16), 2,
         {"vmem_budget_bytes": 600 * 1024}),               # forced two-phase fallback
    ]

    for idx, (name, shape, segment, kw) in enumerate(cases):
        B, C, T, H, W = shape
        kx, kg, kb = jax.random.split(jax.random.fold_in(root, idx), 3)
        x = jax.random.normal(kx, shape, dtype=jnp.float32) * 1.5 + 0.3
        gamma = 1.0 + 0.1 * jax.random.normal(kg, (segment, C), dtype=jnp.float32)
        beta = 0.1 * jax.random.normal(kb, (segment, C), dtype=jnp.float32)

        out = jax.block_until_ready(sync_tgn_forward(x, gamma, beta, segment, **kw))
        ref = _reference(x, gamma, beta, segment)
        assert out.shape == x.shape, f"shape mismatch: {name}"
        assert jnp.allclose(out, ref, atol=1e-4, rtol=1e-4), f"mismatch vs reference: {name}"

    print("KERNEL_OK")
</pallas_src>

<mosaic_0001>
module attributes {stable_mosaic.version = 11 : i64} {
  func.func @_fused_bn_kernel(%arg0: i32, %arg1: i32, %arg2: memref<2x4x1024xf32, #tpu.memory_space<vmem>>, %arg3: memref<1x1x4x1xf32, #tpu.memory_space<vmem>>, %arg4: memref<1x1x4x1xf32, #tpu.memory_space<vmem>>, %arg5: memref<2x4x1024xf32, #tpu.memory_space<vmem>>) attributes {dimension_semantics = [#tpu.dimension_semantics<parallel>, #tpu.dimension_semantics<parallel>], iteration_bounds = array<i64: 2, 1>, scalar_prefetch = 0 : i64, scratch_operands = 0 : i64, tpu.core_type = #tpu.core_type<tc>, window_params = [{transform_indices = @transform_0, window_bounds = array<i64: 2, 4, 1024>}, {transform_indices = @transform_1, window_bounds = array<i64: 1, 1, 4, 1>}, {transform_indices = @transform_2, window_bounds = array<i64: 1, 1, 4, 1>}, {transform_indices = @transform_3, window_bounds = array<i64: 2, 4, 1024>}]} {
    %c0 = arith.constant 0 : index
    %c0_0 = arith.constant 0 : index
    %c0_1 = arith.constant 0 : index
    %0 = vector.load %arg2[%c0, %c0_0, %c0_1] : memref<2x4x1024xf32, #tpu.memory_space<vmem>>, vector<2x4x1024xf32>
    %cst = arith.constant dense<0.000000e+00> : vector<4xf32>
    %1 = vector.multi_reduction <add>, %0, %cst [0, 2] : vector<2x4x1024xf32> to vector<4xf32>
    %2 = vector.shape_cast %1 : vector<4xf32> to vector<1x4x1xf32>
    %cst_2 = arith.constant 2.048000e+03 : f32
    %3 = vector.broadcast %cst_2 : f32 to vector<1x4x1xf32>
    %4 = arith.divf %2, %3 : vector<1x4x1xf32>
    %5 = vector.broadcast %4 : vector<1x4x1xf32> to vector<2x4x1024xf32>
    %6 = arith.subf %0, %5 : vector<2x4x1024xf32>
    %7 = arith.mulf %6, %6 : vector<2x4x1024xf32>
    %cst_3 = arith.constant dense<0.000000e+00> : vector<4xf32>
    %8 = vector.multi_reduction <add>, %7, %cst_3 [0, 2] : vector<2x4x1024xf32> to vector<4xf32>
    %9 = vector.shape_cast %8 : vector<4xf32> to vector<1x4x1xf32>
    %cst_4 = arith.constant 2.048000e+03 : f32
    %10 = vector.broadcast %cst_4 : f32 to vector<1x4x1xf32>
    %11 = arith.divf %9, %10 : vector<1x4x1xf32>
    %c0_5 = arith.constant 0 : index
    %c0_6 = arith.constant 0 : index
    %c0_7 = arith.constant 0 : index
    %c0_8 = arith.constant 0 : index
    %12 = vector.load %arg3[%c0_5, %c0_6, %c0_7, %c0_8] : memref<1x1x4x1xf32, #tpu.memory_space<vmem>>, vector<1x1x4x1xf32>
    %13 = vector.shape_cast %12 : vector<1x1x4x1xf32> to vector<1x4x1xf32>
    %c0_9 = arith.constant 0 : index
    %c0_10 = arith.constant 0 : index
    %c0_11 = arith.constant 0 : index
    %c0_12 = arith.constant 0 : index
    %14 = vector.load %arg4[%c0_9, %c0_10, %c0_11, %c0_12] : memref<1x1x4x1xf32, #tpu.memory_space<vmem>>, vector<1x1x4x1xf32>
    %15 = vector.shape_cast %14 : vector<1x1x4x1xf32> to vector<1x4x1xf32>
    %cst_13 = arith.constant 9.99999974E-6 : f32
    %16 = vector.broadcast %cst_13 : f32 to vector<1x4x1xf32>
    %17 = arith.addf %11, %16 : vector<1x4x1xf32>
    %18 = math.rsqrt %17 : vector<1x4x1xf32>
    %19 = arith.mulf %13, %18 : vector<1x4x1xf32>
    %20 = vector.broadcast %19 : vector<1x4x1xf32> to vector<2x4x1024xf32>
    %21 = arith.mulf %6, %20 : vector<2x4x1024xf32>
    %22 = vector.broadcast %15 : vector<1x4x1xf32> to vector<2x4x1024xf32>
    %23 = arith.addf %21, %22 : vector<2x4x1024xf32>
    %c0_14 = arith.constant 0 : index
    %c0_15 = arith.constant 0 : index
    %c0_16 = arith.constant 0 : index
    %24 = vector.load %arg5[%c0_14, %c0_15, %c0_16] : memref<2x4x1024xf32, #tpu.memory_space<vmem>>, vector<2x4x1024xf32>
    tpu.vector_store %arg5[%c0_14, %c0_15, %c0_16], %23 {strides = array<i32>} : memref<2x4x1024xf32, #tpu.memory_space<vmem>>, vector<2x4x1024xf32>,
    return
  }
  func.func @transform_0(%arg0: i32, %arg1: i32) -> (i32, i32, i32) {
    %c0_i32 = arith.constant 0 : i32
    %c0_i32_0 = arith.constant 0 : i32
    return %c0_i32, %arg1, %arg0 : i32, i32, i32
  }
  func.func @transform_1(%arg0: i32, %arg1: i32) -> (i32, i32, i32, i32) {
    %c0_i32 = arith.constant 0 : i32
    %c0_i32_0 = arith.constant 0 : i32
    %c0_i32_1 = arith.constant 0 : i32
    return %arg0, %arg1, %c0_i32, %c0_i32_0 : i32, i32, i32, i32
  }
  func.func @transform_2(%arg0: i32, %arg1: i32) -> (i32, i32, i32, i32) {
    %c0_i32 = arith.constant 0 : i32
    %c0_i32_0 = arith.constant 0 : i32
    %c0_i32_1 = arith.constant 0 : i32
    return %arg0, %arg1, %c0_i32, %c0_i32_0 : i32, i32, i32, i32
  }
  func.func @transform_3(%arg0: i32, %arg1: i32) -> (i32, i32, i32) {
    %c0_i32 = arith.constant 0 : i32
    %c0_i32_0 = arith.constant 0 : i32
    return %c0_i32, %arg1, %arg0 : i32, i32, i32
  }
}

</mosaic_0001>

<llo_original>
// kernel: tpu_custom_call.1
$region0: #{tpu_custom_call.1}
  #allocation0 [shape = 'u32[]', space=smem, size = 0x4, offset = 0x4, fixed_abs, tag = 'smem constant byte address 0x4 - core index']
  #allocation1 [shape = 'u32[144,128]{1,0:T(1,128)}', space=vmem, size = 0x12000, scoped, tag = 'internal scratch']
  %s0 = inlined_call_operand.hbm [shape: f32[2,4,2048], index: 0, kind: input, shape index: {}]
  %s1 = inlined_call_operand.vmem [shape: f32[2,1,4,1], index: 1, kind: input, shape index: {}]
  %s2 = inlined_call_operand.vmem [shape: f32[2,1,4,1], index: 2, kind: input, shape index: {}]
  %s3 = inlined_call_operand.hbm [shape: f32[2,4,2048], index: 3, kind: output, shape index: {}]
  %s4 = sld [smem:[#allocation0]]
  $region49: #{tpu_custom_call.1} parent=0
    _
  %s6 = ssub.s32 1, %s4
  %s7 = scalar_select 0, %s6, %s4
  $region1: #{tpu_custom_call.1} parent=0
    #allocation2 [shape = 'u8[65536]{0}', space=vmem, size = 0x10000, scoped, tag = 'input window, operand 0']
    #allocation3 [shape = 's32[2]{0}', space=sflag, size = 0x8, scoped, tag = 'scoped memory for tpu_custom_call.1']
    #allocation4 [shape = 's32[2]{0}', space=sflag, size = 0x8, scoped, tag = 'scoped memory for tpu_custom_call.1']
    #allocation5 [shape = 'u8[65536]{0}', space=vmem, size = 0x10000, scoped, tag = 'output window, operand 0']
    %8 = vsyncpa [#allocation3], 0
    %s9 = scalar_lea.sflag [#allocation3], 1
    %10 = vsyncpa %s9, 0
    %11 = vsyncpa [#allocation4], 0
    %s12 = scalar_lea.sflag [#allocation4], 1
    %13 = vsyncpa %s12, 0
    loop: start=0, step=1, limit=4
    $region2: #{tpu_custom_call.1} parent=1 // loop_pre_header
      _
    $region3: #{tpu_custom_call.1} parent=1 // loop_header
      %s15 = sphi 0, %s19
      %p16 = scmp.ge.s32.totalorder %s15, 4
      %s22 = sphi 0, %s34
      %s23 = sphi 0, %s30
      %s24 = sphi 0, %s22
      %s25 = sphi 0, %s23
      %s26 = sphi 0, %s24
      %s27 = sphi 0, %s25
      %s39 = sphi 0, %s41
      %s42 = sphi 0, %s39
      %s43 = sphi 0, %s42
      %s59 = sphi 0, %s43
      %s67 = sphi 0, %s69
      %s70 = sphi 0, %s67
      %s71 = sphi 0, %s70
      %s87 = sphi 0, %s71
      %s95 = sphi 0, %s97
      %s98 = sphi 0, %s95
      %s99 = sphi 0, %s98
      %s115 = sphi 0, %s99
      %s123 = sphi 0, %s125
      %s126 = sphi 0, %s123
      %s127 = sphi 0, %s126
      %s143 = sphi 0, %s127
    $region4: #{tpu_custom_call.1} parent=1 // loop_header_branch
      %18 = sbr.rel (%p16) target = $region8
    $region5: #{tpu_custom_call.1} parent=1 // loop_body
      %s20 = ssub.s32 %s15, 1
      %s21 = ssub.s32 %s15, 2
      %s28 = sadd.s32 1, %s23
      %p29 = scmp.ge.s32.totalorder %s28, 1
      %s30 = scalar_select %p29, 0, %s28
      %s31 = sadd.s32 1, %s22
      %s32 = scalar_select %p29, %s31, %s22
      %p33 = scmp.ge.s32.totalorder %s32, 2
      %s34 = scalar_select %p33, 0, %s32
      %s35 = ssub.s32 %s23, %s30
      %s36 = ssub.s32 %s22, %s34
      %s37 = sor.u32 %s35, %s36
      %p38 = scmp.eq.s32.totalorder %s37, 0
      %s40 = sadd.s32 %s39, 1
      %s41 = scalar_select %p38, %s39, %s40
      %p44 = pneg %p38
      %p45 = scmp.eq.s32.totalorder %s15, 1
      %p46 = por %p44, %p45
      %p47 = scmp.ne.s32.totalorder %s39, %s42
      %p48 = scmp.eq.s32.totalorder %s15, 0
      %p49 = por %p47, %p48
      %p50 = scmp.ne.s32.totalorder %s39, %s42
      %p51 = scmp.eq.s32.totalorder %s20, 1
      %p52 = por %p50, %p51
      %p53 = scmp.ne.s32.totalorder %s42, %s43
      %p54 = scmp.eq.s32.totalorder %s20, 0
      %p55 = por %p53, %p54
      %p56 = scmp.ne.s32.totalorder %s42, %s43
      %p57 = scmp.eq.s32.totalorder %s21, 1
      %p58 = por %p56, %p57
      %p60 = scmp.ne.s32.totalorder %s43, %s59
      %p61 = scmp.eq.s32.totalorder %s21, 0
      %p62 = por %p60, %p61
      %s63 = ssub.s32 %s22, %s34
      %s64 = ssub.s32 %s23, %s30
      %s65 = sor.u32 %s63, %s64
      %p66 = scmp.eq.s32.totalorder %s65, 0
      %s68 = sadd.s32 %s67, 1
      %s69 = scalar_select %p66, %s67, %s68
      %p72 = pneg %p66
      %p73 = scmp.eq.s32.totalorder %s15, 1
      %p74 = por %p72, %p73
      %p75 = scmp.ne.s32.totalorder %s67, %s70
      %p76 = scmp.eq.s32.totalorder %s15, 0
      %p77 = por %p75, %p76
      %p78 = scmp.ne.s32.totalorder %s67, %s70
      %p79 = scmp.eq.s32.totalorder %s20, 1
      %p80 = por %p78, %p79
      %p81 = scmp.ne.s32.totalorder %s70, %s71
      %p82 = scmp.eq.s32.totalorder %s20, 0
      %p83 = por %p81, %p82
      %p84 = scmp.ne.s32.totalorder %s70, %s71
      %p85 = scmp.eq.s32.totalorder %s21, 1
      %p86 = por %p84, %p85
      %p88 = scmp.ne.s32.totalorder %s71, %s87
      %p89 = scmp.eq.s32.totalorder %s21, 0
      %p90 = por %p88, %p89
      %s91 = ssub.s32 %s22, %s34
      %s92 = ssub.s32 %s23, %s30
      %s93 = sor.u32 %s91, %s92
      %p94 = scmp.eq.s32.totalorder %s93, 0
      %s96 = sadd.s32 %s95, 1
      %s97 = scalar_select %p94, %s95, %s96
      %p100 = pneg %p94
      %p101 = scmp.eq.s32.totalorder %s15, 1
      %p102 = por %p100, %p101
      %p103 = scmp.ne.s32.totalorder %s95, %s98
      %p104 = scmp.eq.s32.totalorder %s15, 0
      %p105 = por %p103, %p104
      %p106 = scmp.ne.s32.totalorder %s95, %s98
      %p107 = scmp.eq.s32.totalorder %s20, 1
      %p108 = por %p106, %p107
      %p109 = scmp.ne.s32.totalorder %s98, %s99
      %p110 = scmp.eq.s32.totalorder %s20, 0
      %p111 = por %p109, %p110
      %p112 = scmp.ne.s32.totalorder %s98, %s99
      %p113 = scmp.eq.s32.totalorder %s21, 1
      %p114 = por %p112, %p113
      %p116 = scmp.ne.s32.totalorder %s99, %s115
      %p117 = scmp.eq.s32.totalorder %s21, 0
      %p118 = por %p116, %p117
      %s119 = ssub.s32 %s23, %s30
      %s120 = ssub.s32 %s22, %s34
      %s121 = sor.u32 %s119, %s120
      %p122 = scmp.eq.s32.totalorder %s121, 0
      %s124 = sadd.s32 %s123, 1
      %s125 = scalar_select %p122, %s123, %s124
      %p128 = pneg %p122
      %p129 = scmp.eq.s32.totalorder %s15, 1
      %p130 = por %p128, %p129
      %p131 = scmp.ne.s32.totalorder %s123, %s126
      %p132 = scmp.eq.s32.totalorder %s15, 0
      %p133 = por %p131, %p132
      %p134 = scmp.ne.s32.totalorder %s123, %s126
      %p135 = scmp.eq.s32.totalorder %s20, 1
      %p136 = por %p134, %p135
      %p137 = scmp.ne.s32.totalorder %s126, %s127
      %p138 = scmp.eq.s32.totalorder %s20, 0
      %p139 = por %p137, %p138
      %p140 = scmp.ne.s32.totalorder %s126, %s127
      %p141 = scmp.eq.s32.totalorder %s21, 1
      %p142 = por %p140, %p141
      %p144 = scmp.ne.s32.totalorder %s127, %s143
      %p145 = scmp.eq.s32.totalorder %s21, 0
      %p146 = por %p144, %p145
      %p147 = scmp.le.s32.totalorder 1, %s15
      %p148 = scmp.lt.s32.totalorder %s15, 3
      %p149 = pnand %p147, %p148
      %p150 = pneg %p149
      // Predicated region
      $region9: #{tpu_custom_call.1} parent=5 // pred_check
        _
      $region10: #{tpu_custom_call.1} parent=5 // pred_check_branch
        %152 = sbr.rel (%p149) target = $region12
      $region11: #{tpu_custom_call.1} parent=5 // pred_region
        %s153 = ssub.s32 %s15, 1
      $region12: #{tpu_custom_call.1} parent=5 // pred_fallthru
        _
      %p154 = scmp.lt.s32.totalorder %s15, 2
      // Predicated region
      $region13: #{tpu_custom_call.1} parent=5 // pred_check
        %p155 = pneg %p154
      $region14: #{tpu_custom_call.1} parent=5 // pred_check_branch
        %157 = sbr.rel (%p155) target = $region16
      $region15: #{tpu_custom_call.1} parent=5 // pred_region
        // Predicated region
        $region17: #{tpu_custom_call.1} parent=15 // pred_check
          %p158 = pneg %p49
        $region18: #{tpu_custom_call.1} parent=15 // pred_check_branch
          %160 = sbr.rel (%p158) target = $region20
        $region19: #{tpu_custom_call.1} parent=15 // pred_region
          %s161 = sand.u32 %s39, 1
          %s162 = scalar_lea.sflag [#allocation3], %s161
          %s163 = sand.u32 %s39, 1
          %s164 = smul.addr %s163, 64
          %s165 = scalar_lea.vmem [#allocation2], %s164
          %s166 = smul.u32 8, %s22
          %s168 = ssub.s32 1024, 1024
          %169 = vsyncadd %s162, %s168
          %s170 = smul.addr %s23, 16
          %s171 = sadd.s32 %s166, %s170
          %s172 = smul.addr %s171, 64
          %s173 = scalar_lea.hbm %s0, %s172
          %s174 = sshll.u32 %s165, 4
          %s175 = int_to_ptr.vmem [resolvable:$true] %s174
          %180 = dma.hbm_to_vmem [thread:$0]  %s173, 1024, %s175, %s162, 1024, 512, 32
        $region20: #{tpu_custom_call.1} parent=15 // pred_fallthru
          _
        // Predicated region
        $region21: #{tpu_custom_call.1} parent=15 // pred_check
          %p181 = pneg %p77
        $region22: #{tpu_custom_call.1} parent=15 // pred_check_branch
          %183 = sbr.rel (%p181) target = $region24
        $region23: #{tpu_custom_call.1} parent=15 // pred_region
          %p184 = scmp.lt.s32.totalorder %s22, 1
          %s185 = scalar_select %p184, %s22, 1
          %p186 = scmp.lt.s32.totalorder %s23, 0
          %s187 = scalar_select %p186, %s23, 0
          %s188 = sadd.s32 %s187, %s185
          %s189 = smul.addr %s188, 4
          %s190 = scalar_lea.vmem %s1, %s189
        $region24: #{tpu_custom_call.1} parent=15 // pred_fallthru
          _
        // Predicated region
        $region25: #{tpu_custom_call.1} parent=15 // pred_check
          %p191 = pneg %p105
        $region26: #{tpu_custom_call.1} parent=15 // pred_check_branch
          %193 = sbr.rel (%p191) target = $region28
        $region27: #{tpu_custom_call.1} parent=15 // pred_region
          %p194 = scmp.lt.s32.totalorder %s22, 1
          %s195 = scalar_select %p194, %s22, 1
          %p196 = scmp.lt.s32.totalorder %s23, 0
          %s197 = scalar_select %p196, %s23, 0
          %s198 = sadd.s32 %s197, %s195
          %s199 = smul.addr %s198, 4
          %s200 = scalar_lea.vmem %s2, %s199
        $region28: #{tpu_custom_call.1} parent=15 // pred_fallthru
          _
      $region16: #{tpu_custom_call.1} parent=5 // pred_fallthru
        _
      %p201 = scmp.le.s32.totalorder 1, %s15
      %p202 = scmp.lt.s32.totalorder %s15, 3
      %p203 = pnand %p201, %p202
      %p204 = pneg %p203
      // Predicated region
      $region29: #{tpu_custom_call.1} parent=5 // pred_check
        _
      $region30: #{tpu_custom_call.1} parent=5 // pred_check_branch
        %206 = sbr.rel (%p203) target = $region32
      $region31: #{tpu_custom_call.1} parent=5 // pred_region
        %s207 = ssub.s32 %s15, 1
        %s208 = sand.u32 %s42, 1
        %s209 = scalar_lea.sflag [#allocation3], %s208
        %s210 = sand.u32 %s42, 1
        %s211 = smul.addr %s210, 64
        %s212 = scalar_lea.vmem [#allocation2], %s211
        // Predicated region
        $region33: #{tpu_custom_call.1} parent=31 // pred_check
          %p213 = pneg %p55
        $region34: #{tpu_custom_call.1} parent=31 // pred_check_branch
          %215 = sbr.rel (%p213) target = $region36
        $region35: #{tpu_custom_call.1} parent=31 // pred_region
          %216 = dma.done %s209, 1024
        $region36: #{tpu_custom_call.1} parent=31 // pred_fallthru
          _
        %s217 = sand.u32 %s42, 1
        %s218 = scalar_lea.sflag [#allocation3], %s217
        %s219 = sand.u32 %s42, 1
        %s220 = smul.addr %s219, 64
        %s221 = scalar_lea.vmem [#allocation2], %s220
        %p222 = pneg %p55
        %p223 = pneg %p52
        %p224 = scmp.lt.s32.totalorder %s24, 1
        %s225 = scalar_select %p224, %s24, 1
        %p226 = scmp.lt.s32.totalorder %s25, 0
        %s227 = scalar_select %p226, %s25, 0
        %s228 = sadd.s32 %s227, %s225
        %s229 = smul.addr %s228, 4
        %s230 = scalar_lea.vmem %s1, %s229
        %p231 = pneg %p83
        %p232 = pneg %p80
        %p233 = scmp.lt.s32.totalorder %s24, 1
        %s234 = scalar_select %p233, %s24, 1
        %p235 = scmp.lt.s32.totalorder %s25, 0
        %s236 = scalar_select %p235, %s25, 0
        %s237 = sadd.s32 %s236, %s234
        %s238 = smul.addr %s237, 4
        %s239 = scalar_lea.vmem %s2, %s238
        %p240 = pneg %p111
        %p241 = pneg %p108
        %p242 = pneg %p139
        %p243 = pneg %p136
        %s244 = sand.u32 %s126, 1
        %s245 = scalar_lea.sflag [#allocation4], %s244
        %s246 = sand.u32 %s126, 1
        %s247 = smul.addr %s246, 64
        %s248 = scalar_lea.vmem [#allocation5], %s247
        %s249 = smul.u32 8, %s24
        %p250 = scmp.lt.s32.totalorder %s24, 1
        %s251 = scalar_select %p250, %s24, 1
        %p252 = scmp.lt.s32.totalorder %s25, 0
        %s253 = scalar_select %p252, %s25, 0
        %s254 = sadd.s32 %s253, %s251
        %s255 = smul.addr %s254, 4
        %s256 = scalar_lea.vmem %s1, %s255
        %p257 = scmp.lt.s32.totalorder %s24, 1
        %s258 = scalar_select %p257, %s24, 1
        %p259 = scmp.lt.s32.totalorder %s25, 0
        %s260 = scalar_select %p259, %s25, 0
        %s261 = sadd.s32 %s260, %s258
        %s262 = smul.addr %s261, 4
        %s263 = scalar_lea.vmem %s2, %s262
        %s264 = smul.u32 8, %s24
        %v265 = vld [vmem:[%s212] sm:$0xff]
        %v266 = vld [vmem:[%s212 + $0x8] sm:$0xff]
        %v267 = vld [vmem:[%s212 + $0x10] sm:$0xff]
        %v268 = vld [vmem:[%s212 + $0x18] sm:$0xff]
        %v269 = vld [vmem:[%s212 + $0x20] sm:$0xff]
        %v270 = vld [vmem:[%s212 + $0x28] sm:$0xff]
        %v271 = vld [vmem:[%s212 + $0x30] sm:$0xff]
        %v272 = vld [vmem:[%s212 + $0x38] sm:$0xff]
        %v281 = vcombine.high %v265, %v265
        %v282 = vcombine.high %v266, %v266
        %v283 = vcombine.high %v267, %v267
        %v284 = vcombine.high %v268, %v268
        %v285 = vcombine.high %v269, %v269
        %v286 = vcombine.high %v270, %v270
        %v287 = vcombine.high %v271, %v271
        %v288 = vcombine.high %v272, %v272
        %vm297 = vcmask 1043456
        %v298 = vsel %vm297, %v265, 0.0
        %v299 = vsel %vm297, %v281, 0.0
        %v300 = vadd.f32 %v298, %v299
        %v301 = vsel %vm297, %v266, 0.0
        %v302 = vadd.f32 %v300, %v301
        %v303 = vsel %vm297, %v282, 0.0
        %v304 = vadd.f32 %v302, %v303
        %v305 = vsel %vm297, %v267, 0.0
        %v306 = vadd.f32 %v304, %v305
        %v307 = vsel %vm297, %v283, 0.0
        %v308 = vadd.f32 %v306, %v307
        %v309 = vsel %vm297, %v268, 0.0
        %v310 = vadd.f32 %v308, %v309
        %v311 = vsel %vm297, %v284, 0.0
        %v312 = vadd.f32 %v310, %v311
        %v313 = vsel %vm297, %v269, 0.0
        %v314 = vadd.f32 %v312, %v313
        %v315 = vsel %vm297, %v285, 0.0
        %v316 = vadd.f32 %v314, %v315
        %v317 = vsel %vm297, %v270, 0.0
        %v318 = vadd.f32 %v316, %v317
        %v319 = vsel %vm297, %v286, 0.0
        %v320 = vadd.f32 %v318, %v319
        %v321 = vsel %vm297, %v271, 0.0
        %v322 = vadd.f32 %v320, %v321
        %v323 = vsel %vm297, %v287, 0.0
        %v324 = vadd.f32 %v322, %v323
        %v325 = vsel %vm297, %v272, 0.0
        %v326 = vadd.f32 %v324, %v325
        %v327 = vsel %vm297, %v288, 0.0
        %v328 = vadd.f32 %v326, %v327
        %329 = vadd.xlane.f32.xlu0 %v328
        %v330 = vpop.xlane.xlu0 %329
        %v331 = vrcp.pop 2048.0
        %v332 = vmul.f32 %v330, %v331
        %v335 = vunpack.c.l.s4 839922192
        %v336 = vunpack.c.0.s8 %v335
        %v337 = vlaneseq
        %v338 = vshrl.u32 %v337, 7
        %v339 = vsub.s32 %v336, %v338
        %v340 = vrot.slane %v332, %v339
        %v342 = vsub.f32 %v265, %v340
        %v343 = vsub.f32 %v266, %v340
        %v344 = vsub.f32 %v267, %v340
        %v345 = vsub.f32 %v268, %v340
        %v346 = vsub.f32 %v269, %v340
        %v347 = vsub.f32 %v270, %v340
        %v348 = vsub.f32 %v271, %v340
        %v349 = vsub.f32 %v272, %v340
        %v350 = vmul.f32 %v342, %v342
        %v351 = vmul.f32 %v343, %v343
        %v352 = vmul.f32 %v344, %v344
        %v353 = vmul.f32 %v345, %v345
        %v354 = vmul.f32 %v346, %v346
        %v355 = vmul.f32 %v347, %v347
        %v356 = vmul.f32 %v348, %v348
        %v357 = vmul.f32 %v349, %v349
        %v366 = vcombine.high %v350, %v350
        %v367 = vcombine.high %v351, %v351
        %v368 = vcombine.high %v352, %v352
        %v369 = vcombine.high %v353, %v353
        %v370 = vcombine.high %v354, %v354
        %v371 = vcombine.high %v355, %v355
        %v372 = vcombine.high %v356, %v356
        %v373 = vcombine.high %v357, %v357
        %v382 = vsel %vm297, %v350, 0.0
        %v383 = vsel %vm297, %v366, 0.0
        %v384 = vadd.f32 %v382, %v383
        %v385 = vsel %vm297, %v351, 0.0
        %v386 = vadd.f32 %v384, %v385
        %v387 = vsel %vm297, %v367, 0.0
        %v388 = vadd.f32 %v386, %v387
        %v389 = vsel %vm297, %v352, 0.0
        %v390 = vadd.f32 %v388, %v389
        %v391 = vsel %vm297, %v368, 0.0
        %v392 = vadd.f32 %v390, %v391
        %v393 = vsel %vm297, %v353, 0.0
        %v394 = vadd.f32 %v392, %v393
        %v395 = vsel %vm297, %v369, 0.0
        %v396 = vadd.f32 %v394, %v395
        %v397 = vsel %vm297, %v354, 0.0
        %v398 = vadd.f32 %v396, %v397
        %v399 = vsel %vm297, %v370, 0.0
        %v400 = vadd.f32 %v398, %v399
        %v401 = vsel %vm297, %v355, 0.0
        %v402 = vadd.f32 %v400, %v401
        %v403 = vsel %vm297, %v371, 0.0
        %v404 = vadd.f32 %v402, %v403
        %v405 = vsel %vm297, %v356, 0.0
        %v406 = vadd.f32 %v404, %v405
        %v407 = vsel %vm297, %v372, 0.0
        %v408 = vadd.f32 %v406, %v407
        %v409 = vsel %vm297, %v357, 0.0
        %v410 = vadd.f32 %v408, %v409
        %v411 = vsel %vm297, %v373, 0.0
        %v412 = vadd.f32 %v410, %v411
        %413 = vadd.xlane.f32.xlu0 %v412
        %v414 = vpop.xlane.xlu0 %413
        %v415 = vmul.f32 %v414, %v331
        %v416 = vld [vmem:[%s256] sm:$0xf]
        %v417 = vld [vmem:[%s263] sm:$0xf]
        %v418 = vadd.f32 %v415, 1e-05
        %v419 = vrsqrt.pop %v418
        %v420 = vmul.f32 %v416, %v419
        %422 = vset.pattern.permute.xlu0 0
        %423 = vperm.xlu0 %422, %v420
        %v424 = vpop.permute.xlu0 %423
        %v426 = vunpack.c.l.s4 839922192
        %v427 = vunpack.c.0.s8 %v426
        %v428 = vlaneseq
        %v429 = vshrl.u32 %v428, 7
        %v430 = vsub.s32 %v427, %v429
        %v431 = vrot.slane %v424, %v430
        %v433 = vmul.f32 %v342, %v431
        %v434 = vmul.f32 %v343, %v431
        %v435 = vmul.f32 %v344, %v431
        %v436 = vmul.f32 %v345, %v431
        %v437 = vmul.f32 %v346, %v431
        %v438 = vmul.f32 %v347, %v431
        %v439 = vmul.f32 %v348, %v431
        %v440 = vmul.f32 %v349, %v431
        %442 = vset.pattern.permute.xlu0 0
        %443 = vperm.xlu0 %442, %v417
        %v444 = vpop.permute.xlu0 %443
        %v446 = vunpack.c.l.s4 839922192
        %v447 = vunpack.c.0.s8 %v446
        %v448 = vlaneseq
        %v449 = vshrl.u32 %v448, 7
        %v450 = vsub.s32 %v447, %v449
        %v451 = vrot.slane %v444, %v450
        %v453 = vadd.f32 %v433, %v451
        %v454 = vadd.f32 %v434, %v451
        %v455 = vadd.f32 %v435, %v451
        %v456 = vadd.f32 %v436, %v451
        %v457 = vadd.f32 %v437, %v451
        %v458 = vadd.f32 %v438, %v451
        %v459 = vadd.f32 %v439, %v451
        %v460 = vadd.f32 %v440, %v451
        %461 = vst [vmem:[%s248] sm:$0xff] %v453
        %462 = vst [vmem:[%s248 + $0x8] sm:$0xff] %v454
        %463 = vst [vmem:[%s248 + $0x10] sm:$0xff] %v455
        %464 = vst [vmem:[%s248 + $0x18] sm:$0xff] %v456
        %465 = vst [vmem:[%s248 + $0x20] sm:$0xff] %v457
        %466 = vst [vmem:[%s248 + $0x28] sm:$0xff] %v458
        %467 = vst [vmem:[%s248 + $0x30] sm:$0xff] %v459
        %468 = vst [vmem:[%s248 + $0x38] sm:$0xff] %v460
        %s469 = sand.u32 %s126, 1
        %s470 = scalar_lea.sflag [#allocation4], %s469
        %s471 = sand.u32 %s126, 1
        %s472 = smul.addr %s471, 64
        %s473 = scalar_lea.vmem [#allocation5], %s472
        // Predicated region
        $region37: #{tpu_custom_call.1} parent=31 // pred_check
          %p474 = pneg %p136
        $region38: #{tpu_custom_call.1} parent=31 // pred_check_branch
          %476 = sbr.rel (%p474) target = $region40
        $region39: #{tpu_custom_call.1} parent=31 // pred_region
          %s477 = smul.u32 8, %s24
          %s479 = ssub.s32 1024, 1024
          %480 = vsyncadd %s470, %s479
          %s481 = smul.addr %s25, 16
          %s482 = sadd.s32 %s477, %s481
          %s483 = smul.addr %s482, 64
          %s484 = scalar_lea.hbm %s3, %s483
          %s485 = sshll.u32 %s473, 4
          %s486 = int_to_ptr.vmem [resolvable:$true] %s485
          %491 = dma.vmem_to_hbm [thread:$0]  %s486, 1024, %s484, %s470, 512, 1024, 32
        $region40: #{tpu_custom_call.1} parent=31 // pred_fallthru
          _
      $region32: #{tpu_custom_call.1} parent=5 // pred_fallthru
        _
      %p492 = scmp.le.s32.totalorder 2, %s15
      // Predicated region
      $region41: #{tpu_custom_call.1} parent=5 // pred_check
        %p493 = pneg %p492
      $region42: #{tpu_custom_call.1} parent=5 // pred_check_branch
        %495 = sbr.rel (%p493) target = $region44
      $region43: #{tpu_custom_call.1} parent=5 // pred_region
        %s496 = ssub.s32 %s15, 2
        // Predicated region
        $region45: #{tpu_custom_call.1} parent=43 // pred_check
          %p497 = pneg %p142
        $region46: #{tpu_custom_call.1} parent=43 // pred_check_branch
          %499 = sbr.rel (%p497) target = $region48
        $region47: #{tpu_custom_call.1} parent=43 // pred_region
          %s500 = sand.u32 %s127, 1
          %s501 = scalar_lea.sflag [#allocation4], %s500
          %s502 = sand.u32 %s127, 1
          %s503 = smul.addr %s502, 64
          %s504 = scalar_lea.vmem [#allocation5], %s503
          %505 = dma.done %s501, 1024
        $region48: #{tpu_custom_call.1} parent=43 // pred_fallthru
          _
      $region44: #{tpu_custom_call.1} parent=5 // pred_fallthru
        _
    $region6: #{tpu_custom_call.1} parent=1 // loop_footer
      %s19 = sadd.s32 1, %s15
    $region7: #{tpu_custom_call.1} parent=1 // loop_footer_branch
      %14 = sbr.rel target = $region3
    $region8: #{tpu_custom_call.1} parent=1 // loop_exit
      _
    %506 = vsyncpa [#allocation3], 1
    %s507 = scalar_lea.sflag [#allocation3], 1
    %508 = vsyncpa %s507, 1
    %509 = vsyncpa [#allocation4], 1
    %s510 = scalar_lea.sflag [#allocation4], 1
    %511 = vsyncpa %s510, 1

</llo_original>
